<compile_context>
chip_gen: v7x
topology: tpu7x:2x2x1
jax: 0.10.0
libtpu: 0.0.40
codegen_flags: <defaults>
</compile_context>

<pallas_src>
import functools

import jax
import jax.numpy as jnp
from jax import lax
from jax.experimental import pallas as pl
from jax.experimental.pallas import tpu as pltpu


def _cross_attn_kernel(x_ref, ctx_ref, wq_ref, wk_ref, wv_ref, wo_ref, bo_ref,
                       o_ref, k_scr, v_scr, ho_scr, *,
                       heads, dim_head, m_valid, m_pad, approx_recip):
    # x_ref:  (1, TN, Dq)    ctx_ref: (1, Mp, Dc)
    # wq_ref: (Dq, inner)    wk_ref/wv_ref: (Dc, inner)
    # wo_ref: (inner, Dqp)   bo_ref: (1, Dqp)
    # o_ref:  (1, TN, Dqp)
    # k_scr/v_scr: (Mp, inner) persistent across the query-tile axis
    # ho_scr: (TN, inner) merged per-head outputs (compute dtype)

    # K/V projections: once per batch element (t == 0), persisted in VMEM.
    @pl.when(pl.program_id(1) == 0)
    def _():
        ctx = ctx_ref[0]                                   # input dtype
        k = jnp.dot(ctx, wk_ref[...], preferred_element_type=jnp.float32)
        v = jnp.dot(ctx, wv_ref[...], preferred_element_type=jnp.float32)
        k_scr[...] = k.astype(k_scr.dtype)
        v_scr[...] = v.astype(v_scr.dtype)

    x = x_ref[0]                                           # input dtype
    # `scale` is already folded into wq on the host.
    q = jnp.dot(x, wq_ref[...], preferred_element_type=jnp.float32)   # (TN, inner)
    q = q.astype(x.dtype)            # bf16 stays bf16 on the MXU; no-op for f32
    k = k_scr[...]                                          # (Mp, inner)
    v = v_scr[...]                                          # (Mp, inner)

    tn = q.shape[0]
    if m_pad > m_valid:
        # Hoisted once (not per head): mask for the padded context columns.
        pad_mask = lax.broadcasted_iota(jnp.int32, (tn, m_pad), 1) < m_valid

    for h in range(heads):           # static unroll; body is small (Wo deferred)
        lo = h * dim_head
        hi = lo + dim_head
        qh = q[:, lo:hi]                                    # (TN, d)
        kh = k[:, lo:hi]                                    # (Mp, d)
        vh = v[:, lo:hi]                                    # (Mp, d)

        # Contract over the last dims of both operands -> no kh transpose.
        sim = lax.dot_general(qh, kh, (((1,), (1,)), ((), ())),
                              preferred_element_type=jnp.float32)   # (TN, Mp)
        if m_pad > m_valid:
            sim = jnp.where(pad_mask, sim, jnp.float32(-3.0e38))

        # Numerically-stable softmax over the context axis (f32 throughout).
        m = jnp.max(sim, axis=-1, keepdims=True)
        p = jnp.exp(sim - m)
        denom = jnp.sum(p, axis=-1, keepdims=True)
        if approx_recip:
            attn = p * pl.reciprocal(denom, approx=True)    # EUP vrcp (bf16 path)
        else:
            attn = p / denom                                # exact (f32 path)
        attn = attn.astype(vh.dtype)

        ho = jnp.dot(attn, vh, preferred_element_type=jnp.float32)   # (TN, d)
        ho_scr[:, lo:hi] = ho.astype(ho_scr.dtype)

    # Single output projection with K = inner (one matmul for all heads).
    out = jnp.dot(ho_scr[...], wo_ref[...], preferred_element_type=jnp.float32)
    o_ref[0] = (out + bo_ref[...]).astype(o_ref.dtype)


def cross_attention(x, context, wq, wk, wv, wo, bo, *, heads, dim_head, tn=256):
    """x: (B, N, Dq), context: (B, M, Dc) -> (B, N, Dq).

    Weights are in (in, out) layout (transpose of torch.nn.Linear.weight).
    `tn` caps the query tile (use 128 on v5e to fit the smaller scoped VMEM).
    """
    B, N, Dq = x.shape
    _, M, Dc = context.shape
    inner = heads * dim_head
    scale = dim_head ** -0.5
    compute_dtype = x.dtype

    # Fold scale into wq once on the host (deletes per-tile VPU multiplies).
    wq = wq * jnp.asarray(scale, wq.dtype)

    # Lane-dense output: pad the output-projection dim to a multiple of 128
    # (zero columns in wo / zero bias), slice the result back afterwards.
    Dqp = ((Dq + 127) // 128) * 128
    if Dqp != Dq:
        wo_p = jnp.pad(wo, ((0, 0), (0, Dqp - Dq)))
        bo_p = jnp.pad(bo, (0, Dqp - Dq))
    else:
        wo_p, bo_p = wo, bo
    bo2 = bo_p.reshape(1, Dqp)

    # Context padding: keep the sim lane axis dense (128 multiple for large M,
    # sublane multiple for small M).  Padded columns are masked in the kernel.
    if M % 128 == 0:
        Mp = M
    elif M > 128:
        Mp = ((M + 127) // 128) * 128
    else:
        Mp = ((M + 7) // 8) * 8
    ctx_p = jnp.pad(context, ((0, 0), (0, Mp - M), (0, 0))) if Mp != M else context

    # Query tile: <=tn rows.  tn (default 256) is a multiple of both 8 (f32)
    # and 16 (bf16) sublane packing; if N < tn the tile equals the full dim
    # (legal even when unaligned).  Rows of a padded last tile are computed on
    # garbage and discarded; each output row depends only on its own q row.
    TN = min(N, tn)
    NT = pl.cdiv(N, TN)

    kernel = functools.partial(
        _cross_attn_kernel, heads=heads, dim_head=dim_head,
        m_valid=M, m_pad=Mp,
        approx_recip=(compute_dtype != jnp.float32))

    out_padded = pl.pallas_call(
        kernel,
        out_shape=jax.ShapeDtypeStruct((B, N, Dqp), x.dtype),
        grid_spec=pltpu.PrefetchScalarGridSpec(
            num_scalar_prefetch=0,
            grid=(B, NT),
            in_specs=[
                pl.BlockSpec((1, TN, Dq), lambda b, t: (b, t, 0)),
                pl.BlockSpec((1, Mp, Dc), lambda b, t: (b, 0, 0)),
                pl.BlockSpec((Dq, inner), lambda b, t: (0, 0)),
                pl.BlockSpec((Dc, inner), lambda b, t: (0, 0)),
                pl.BlockSpec((Dc, inner), lambda b, t: (0, 0)),
                pl.BlockSpec((inner, Dqp), lambda b, t: (0, 0)),
                pl.BlockSpec((1, Dqp), lambda b, t: (0, 0)),
            ],
            out_specs=pl.BlockSpec((1, TN, Dqp), lambda b, t: (b, t, 0)),
            scratch_shapes=[
                pltpu.VMEM((Mp, inner), compute_dtype),   # K (persists over NT)
                pltpu.VMEM((Mp, inner), compute_dtype),   # V (persists over NT)
                pltpu.VMEM((TN, inner), compute_dtype),   # merged head outputs
            ],
        ),
        compiler_params=pltpu.CompilerParams(
            # NT must be "arbitrary" (sequential) so the K/V scratch computed at
            # t == 0 is valid for the rest of the batch element; B stays
            # "parallel" for megacore sharding on v7x.
            dimension_semantics=("parallel", "arbitrary"),
            vmem_limit_bytes=48 * 1024 * 1024),
    )(x, ctx_p, wq, wk, wv, wo_p, bo2)

    return out_padded[..., :Dq]


def cross_attention_ref(x, context, wq, wk, wv, wo, bo, *, heads, dim_head):
    """Pure-JAX reference mirroring the PyTorch forward (mask=None, dropout=0)."""
    scale = dim_head ** -0.5
    q = jnp.einsum('bnd,de->bne', x, wq)
    k = jnp.einsum('bmd,de->bme', context, wk)
    v = jnp.einsum('bmd,de->bme', context, wv)

    def split(t):
        b, n, _ = t.shape
        return t.reshape(b, n, heads, dim_head).transpose(0, 2, 1, 3)  # (b,h,n,d)

    qh, kh, vh = split(q), split(k), split(v)
    sim = jnp.einsum('bhid,bhjd->bhij', qh, kh) * scale
    attn = jax.nn.softmax(sim, axis=-1)
    out = jnp.einsum('bhij,bhjd->bhid', attn, vh)
    out = out.transpose(0, 2, 1, 3).reshape(x.shape[0], x.shape[1], heads * dim_head)
    return jnp.einsum('bne,ed->bnd', out, wo) + bo


if __name__ == "__main__":
    # Small shapes consistent with the module (M=12 exercises the context
    # padding + masking path: Mp=16).
    B, N, M = 2, 8, 12
    query_dim, context_dim = 32, 32
    heads, dim_head = 2, 16
    inner = heads * dim_head

    key = jax.random.PRNGKey(0)
    kx, kc, k1, k2, k3, k4, k5 = jax.random.split(key, 7)

    x = jax.random.normal(kx, (B, N, query_dim), dtype=jnp.float32)
    context = jax.random.normal(kc, (B, M, context_dim), dtype=jnp.float32)

    # Deterministic synthetic weights.  PyTorch Linear does x @ W.T; we store
    # weights directly in (in, out) layout so the kernel does x @ W.
    wq = jax.random.normal(k1, (query_dim, inner), dtype=jnp.float32) * 0.05
    wk = jax.random.normal(k2, (context_dim, inner), dtype=jnp.float32) * 0.05
    wv = jax.random.normal(k3, (context_dim, inner), dtype=jnp.float32) * 0.05
    wo = jax.random.normal(k4, (inner, query_dim), dtype=jnp.float32) * 0.05
    bo = jax.random.normal(k5, (query_dim,), dtype=jnp.float32) * 0.05

    # f32 path (exact softmax division, no low-precision casts).
    out = cross_attention(x, context, wq, wk, wv, wo, bo,
                          heads=heads, dim_head=dim_head)
    out = jax.block_until_ready(out)
    ref = cross_attention_ref(x, context, wq, wk, wv, wo, bo,
                              heads=heads, dim_head=dim_head)
    assert out.shape == (B, N, query_dim)
    assert jnp.allclose(out, ref, atol=1e-3, rtol=1e-3)

    # bf16 path (bf16 MXU operands, f32 accumulation, approx reciprocal).
    cast = lambda t: t.astype(jnp.bfloat16)
    out_bf = cross_attention(cast(x), cast(context), cast(wq), cast(wk),
                             cast(wv), cast(wo), cast(bo),
                             heads=heads, dim_head=dim_head)
    out_bf = jax.block_until_ready(out_bf)
    up = lambda t: cast(t).astype(jnp.float32)
    ref_bf = cross_attention_ref(up(x), up(context), up(wq), up(wk),
                                 up(wv), up(wo), up(bo),
                                 heads=heads, dim_head=dim_head)
    assert out_bf.shape == (B, N, query_dim)
    assert jnp.allclose(out_bf.astype(jnp.float32), ref_bf, atol=5e-2, rtol=5e-2)

    print("KERNEL_OK")
</pallas_src>

<mosaic_0001>
module attributes {stable_mosaic.version = 11 : i64} {
  func.func @_cross_attn_kernel(%arg0: i32, %arg1: i32, %arg2: memref<1x8x32xf32, #tpu.memory_space<vmem>>, %arg3: memref<1x16x32xf32, #tpu.memory_space<vmem>>, %arg4: memref<32x32xf32, #tpu.memory_space<vmem>>, %arg5: memref<32x32xf32, #tpu.memory_space<vmem>>, %arg6: memref<32x32xf32, #tpu.memory_space<vmem>>, %arg7: memref<32x128xf32, #tpu.memory_space<vmem>>, %arg8: memref<1x128xf32, #tpu.memory_space<vmem>>, %arg9: memref<1x8x128xf32, #tpu.memory_space<vmem>>, %arg10: memref<16x32xf32, #tpu.memory_space<vmem>>, %arg11: memref<16x32xf32, #tpu.memory_space<vmem>>, %arg12: memref<8x32xf32, #tpu.memory_space<vmem>>) attributes {dimension_semantics = [#tpu.dimension_semantics<parallel>, #tpu.dimension_semantics<arbitrary>], iteration_bounds = array<i64: 2, 1>, scalar_prefetch = 0 : i64, scratch_operands = 3 : i64, tpu.core_type = #tpu.core_type<tc>, window_params = [{transform_indices = @transform_0, window_bounds = array<i64: 1, 8, 32>}, {transform_indices = @transform_1, window_bounds = array<i64: 1, 16, 32>}, {pipeline_mode = #tpu.pipeline_mode<synchronous>, transform_indices = @transform_2, window_bounds = array<i64: 32, 32>}, {pipeline_mode = #tpu.pipeline_mode<synchronous>, transform_indices = @transform_3, window_bounds = array<i64: 32, 32>}, {pipeline_mode = #tpu.pipeline_mode<synchronous>, transform_indices = @transform_4, window_bounds = array<i64: 32, 32>}, {pipeline_mode = #tpu.pipeline_mode<synchronous>, transform_indices = @transform_5, window_bounds = array<i64: 32, 128>}, {pipeline_mode = #tpu.pipeline_mode<synchronous>, transform_indices = @transform_6, window_bounds = array<i64: 1, 128>}, {transform_indices = @transform_7, window_bounds = array<i64: 1, 8, 128>}]} {
    %c0_i32 = arith.constant 0 : i32
    %0 = arith.cmpi eq, %arg1, %c0_i32 : i32
    %1 = arith.extui %0 : i1 to i32
    %c0_i32_0 = arith.constant 0 : i32
    %2 = arith.cmpi ne, %1, %c0_i32_0 : i32
    scf.if %2 {
      %c0_32 = arith.constant 0 : index
      %c0_33 = arith.constant 0 : index
      %c0_34 = arith.constant 0 : index
      %55 = vector.load %arg3[%c0_32, %c0_33, %c0_34] : memref<1x16x32xf32, #tpu.memory_space<vmem>>, vector<1x16x32xf32>
      %56 = vector.shape_cast %55 : vector<1x16x32xf32> to vector<16x32xf32>
      %c0_35 = arith.constant 0 : index
      %c0_36 = arith.constant 0 : index
      %57 = vector.load %arg5[%c0_35, %c0_36] : memref<32x32xf32, #tpu.memory_space<vmem>>, vector<32x32xf32>
      %cst_37 = arith.constant dense<0.000000e+00> : vector<16x32xf32>
      %58 = tpu.matmul %56, %57, %cst_37 {dimension_numbers = #tpu.dot_dimension_numbers<[1], [0], [0], [1], [0, 0, 1, 1], [], []>} : vector<16x32xf32>, vector<32x32xf32>, vector<16x32xf32> -> vector<16x32xf32>
      %c0_38 = arith.constant 0 : index
      %c0_39 = arith.constant 0 : index
      %59 = vector.load %arg6[%c0_38, %c0_39] : memref<32x32xf32, #tpu.memory_space<vmem>>, vector<32x32xf32>
      %cst_40 = arith.constant dense<0.000000e+00> : vector<16x32xf32>
      %60 = tpu.matmul %56, %59, %cst_40 {dimension_numbers = #tpu.dot_dimension_numbers<[1], [0], [0], [1], [0, 0, 1, 1], [], []>} : vector<16x32xf32>, vector<32x32xf32>, vector<16x32xf32> -> vector<16x32xf32>
      %c0_41 = arith.constant 0 : index
      %c0_42 = arith.constant 0 : index
      %61 = vector.load %arg10[%c0_41, %c0_42] : memref<16x32xf32, #tpu.memory_space<vmem>>, vector<16x32xf32>
      tpu.vector_store %arg10[%c0_41, %c0_42], %58 {strides = array<i32>} : memref<16x32xf32, #tpu.memory_space<vmem>>, vector<16x32xf32>,
      %c0_43 = arith.constant 0 : index
      %c0_44 = arith.constant 0 : index
      %62 = vector.load %arg11[%c0_43, %c0_44] : memref<16x32xf32, #tpu.memory_space<vmem>>, vector<16x32xf32>
      tpu.vector_store %arg11[%c0_43, %c0_44], %60 {strides = array<i32>} : memref<16x32xf32, #tpu.memory_space<vmem>>, vector<16x32xf32>,
    } else {
    }
    %c0 = arith.constant 0 : index
    %c0_1 = arith.constant 0 : index
    %c0_2 = arith.constant 0 : index
    %3 = vector.load %arg2[%c0, %c0_1, %c0_2] : memref<1x8x32xf32, #tpu.memory_space<vmem>>, vector<1x8x32xf32>
    %4 = vector.shape_cast %3 : vector<1x8x32xf32> to vector<8x32xf32>
    %c0_3 = arith.constant 0 : index
    %c0_4 = arith.constant 0 : index
    %5 = vector.load %arg4[%c0_3, %c0_4] : memref<32x32xf32, #tpu.memory_space<vmem>>, vector<32x32xf32>
    %cst = arith.constant dense<0.000000e+00> : vector<8x32xf32>
    %6 = tpu.matmul %4, %5, %cst {dimension_numbers = #tpu.dot_dimension_numbers<[1], [0], [0], [1], [0, 0, 1, 1], [], []>} : vector<8x32xf32>, vector<32x32xf32>, vector<8x32xf32> -> vector<8x32xf32>
    %c0_5 = arith.constant 0 : index
    %c0_6 = arith.constant 0 : index
    %7 = vector.load %arg10[%c0_5, %c0_6] : memref<16x32xf32, #tpu.memory_space<vmem>>, vector<16x32xf32>
    %c0_7 = arith.constant 0 : index
    %c0_8 = arith.constant 0 : index
    %8 = vector.load %arg11[%c0_7, %c0_8] : memref<16x32xf32, #tpu.memory_space<vmem>>, vector<16x32xf32>
    %9 = tpu.iota {dimensions = array<i32: 1>} : vector<8x16xi32>
    %c12_i32 = arith.constant 12 : i32
    %10 = vector.broadcast %c12_i32 : i32 to vector<8x16xi32>
    %11 = arith.cmpi slt, %9, %10 : vector<8x16xi32>
    %12 = vector.extract_strided_slice %6 {offsets = [0, 0], sizes = [8, 16], strides = [1, 1]} : vector<8x32xf32> to vector<8x16xf32>
    %13 = vector.extract_strided_slice %7 {offsets = [0, 0], sizes = [16, 16], strides = [1, 1]} : vector<16x32xf32> to vector<16x16xf32>
    %14 = vector.extract_strided_slice %8 {offsets = [0, 0], sizes = [16, 16], strides = [1, 1]} : vector<16x32xf32> to vector<16x16xf32>
    %cst_9 = arith.constant dense<0.000000e+00> : vector<8x16xf32>
    %15 = tpu.matmul %12, %13, %cst_9 {dimension_numbers = #tpu.dot_dimension_numbers<[1], [1], [0], [0], [0, 0, 1, 0], [], []>} : vector<8x16xf32>, vector<16x16xf32>, vector<8x16xf32> -> vector<8x16xf32>
    %cst_10 = arith.constant -3.000000e+38 : f32
    %16 = vector.broadcast %cst_10 : f32 to vector<8x16xf32>
    %17 = arith.select %11, %15, %16 : vector<8x16xi1>, vector<8x16xf32>
    %cst_11 = arith.constant dense<0xFF800000> : vector<8xf32>
    %18 = vector.multi_reduction <maximumf>, %17, %cst_11 [1] : vector<8x16xf32> to vector<8xf32>
    %19 = vector.shape_cast %18 : vector<8xf32> to vector<8x1xf32>
    %20 = vector.broadcast %19 : vector<8x1xf32> to vector<8x16xf32>
    %21 = arith.subf %17, %20 : vector<8x16xf32>
    %22 = math.exp %21 : vector<8x16xf32>
    %cst_12 = arith.constant dense<0.000000e+00> : vector<8xf32>
    %23 = vector.multi_reduction <add>, %22, %cst_12 [1] : vector<8x16xf32> to vector<8xf32>
    %24 = vector.shape_cast %23 : vector<8xf32> to vector<8x1xf32>
    %25 = vector.broadcast %24 : vector<8x1xf32> to vector<8x16xf32>
    %26 = arith.divf %22, %25 : vector<8x16xf32>
    %cst_13 = arith.constant dense<0.000000e+00> : vector<8x16xf32>
    %27 = tpu.matmul %26, %14, %cst_13 {dimension_numbers = #tpu.dot_dimension_numbers<[1], [0], [0], [1], [0, 0, 1, 1], [], []>} : vector<8x16xf32>, vector<16x16xf32>, vector<8x16xf32> -> vector<8x16xf32>
    %c0_14 = arith.constant 0 : index
    %c0_15 = arith.constant 0 : index
    %28 = vector.load %arg12[%c0_14, %c0_15] : memref<8x32xf32, #tpu.memory_space<vmem>>, vector<8x16xf32>
    tpu.vector_store %arg12[%c0_14, %c0_15], %27 {strides = array<i32>} : memref<8x32xf32, #tpu.memory_space<vmem>>, vector<8x16xf32>,
    %29 = vector.extract_strided_slice %6 {offsets = [0, 16], sizes = [8, 16], strides = [1, 1]} : vector<8x32xf32> to vector<8x16xf32>
    %30 = vector.extract_strided_slice %7 {offsets = [0, 16], sizes = [16, 16], strides = [1, 1]} : vector<16x32xf32> to vector<16x16xf32>
    %31 = vector.extract_strided_slice %8 {offsets = [0, 16], sizes = [16, 16], strides = [1, 1]} : vector<16x32xf32> to vector<16x16xf32>
    %cst_16 = arith.constant dense<0.000000e+00> : vector<8x16xf32>
    %32 = tpu.matmul %29, %30, %cst_16 {dimension_numbers = #tpu.dot_dimension_numbers<[1], [1], [0], [0], [0, 0, 1, 0], [], []>} : vector<8x16xf32>, vector<16x16xf32>, vector<8x16xf32> -> vector<8x16xf32>
    %cst_17 = arith.constant -3.000000e+38 : f32
    %33 = vector.broadcast %cst_17 : f32 to vector<8x16xf32>
    %34 = arith.select %11, %32, %33 : vector<8x16xi1>, vector<8x16xf32>
    %cst_18 = arith.constant dense<0xFF800000> : vector<8xf32>
    %35 = vector.multi_reduction <maximumf>, %34, %cst_18 [1] : vector<8x16xf32> to vector<8xf32>
    %36 = vector.shape_cast %35 : vector<8xf32> to vector<8x1xf32>
    %37 = vector.broadcast %36 : vector<8x1xf32> to vector<8x16xf32>
    %38 = arith.subf %34, %37 : vector<8x16xf32>
    %39 = math.exp %38 : vector<8x16xf32>
    %cst_19 = arith.constant dense<0.000000e+00> : vector<8xf32>
    %40 = vector.multi_reduction <add>, %39, %cst_19 [1] : vector<8x16xf32> to vector<8xf32>
    %41 = vector.shape_cast %40 : vector<8xf32> to vector<8x1xf32>
    %42 = vector.broadcast %41 : vector<8x1xf32> to vector<8x16xf32>
    %43 = arith.divf %39, %42 : vector<8x16xf32>
    %cst_20 = arith.constant dense<0.000000e+00> : vector<8x16xf32>
    %44 = tpu.matmul %43, %31, %cst_20 {dimension_numbers = #tpu.dot_dimension_numbers<[1], [0], [0], [1], [0, 0, 1, 1], [], []>} : vector<8x16xf32>, vector<16x16xf32>, vector<8x16xf32> -> vector<8x16xf32>
    %c0_21 = arith.constant 0 : index
    %c16 = arith.constant 16 : index
    %45 = vector.load %arg12[%c0_21, %c16] : memref<8x32xf32, #tpu.memory_space<vmem>>, vector<8x16xf32>
    tpu.vector_store %arg12[%c0_21, %c16], %44 {strides = array<i32>} : memref<8x32xf32, #tpu.memory_space<vmem>>, vector<8x16xf32>,
    %c0_22 = arith.constant 0 : index
    %c0_23 = arith.constant 0 : index
    %46 = vector.load %arg12[%c0_22, %c0_23] : memref<8x32xf32, #tpu.memory_space<vmem>>, vector<8x32xf32>
    %c0_24 = arith.constant 0 : index
    %c0_25 = arith.constant 0 : index
    %47 = vector.load %arg7[%c0_24, %c0_25] : memref<32x128xf32, #tpu.memory_space<vmem>>, vector<32x128xf32>
    %cst_26 = arith.constant dense<0.000000e+00> : vector<8x128xf32>
    %48 = tpu.matmul %46, %47, %cst_26 {dimension_numbers = #tpu.dot_dimension_numbers<[1], [0], [0], [1], [0, 0, 1, 1], [], []>} : vector<8x32xf32>, vector<32x128xf32>, vector<8x128xf32> -> vector<8x128xf32>
    %c0_27 = arith.constant 0 : index
    %c0_28 = arith.constant 0 : index
    %49 = vector.load %arg8[%c0_27, %c0_28] : memref<1x128xf32, #tpu.memory_space<vmem>>, vector<1x128xf32>
    %50 = vector.broadcast %49 : vector<1x128xf32> to vector<8x128xf32>
    %51 = arith.addf %48, %50 : vector<8x128xf32>
    %c0_29 = arith.constant 0 : index
    %c0_30 = arith.constant 0 : index
    %c0_31 = arith.constant 0 : index
    %52 = vector.load %arg9[%c0_29, %c0_30, %c0_31] : memref<1x8x128xf32, #tpu.memory_space<vmem>>, vector<1x8x128xf32>
    %53 = vector.shape_cast %52 : vector<1x8x128xf32> to vector<8x128xf32>
    %54 = vector.shape_cast %51 : vector<8x128xf32> to vector<1x8x128xf32>
    tpu.vector_store %arg9[%c0_29, %c0_30, %c0_31], %54 {strides = array<i32>} : memref<1x8x128xf32, #tpu.memory_space<vmem>>, vector<1x8x128xf32>,
    return
  }
  func.func @transform_0(%arg0: i32, %arg1: i32) -> (i32, i32, i32) {
    %c0_i32 = arith.constant 0 : i32
    %c0_i32_0 = arith.constant 0 : i32
    return %arg0, %arg1, %c0_i32 : i32, i32, i32
  }
  func.func @transform_1(%arg0: i32, %arg1: i32) -> (i32, i32, i32) {
    %c0_i32 = arith.constant 0 : i32
    %c0_i32_0 = arith.constant 0 : i32
    %c0_i32_1 = arith.constant 0 : i32
    return %arg0, %c0_i32, %c0_i32_0 : i32, i32, i32
  }
  func.func @transform_2(%arg0: i32, %arg1: i32) -> (i32, i32) {
    %c0_i32 = arith.constant 0 : i32
    %c0_i32_0 = arith.constant 0 : i32
    %c0_i32_1 = arith.constant 0 : i32
    return %c0_i32, %c0_i32_0 : i32, i32
  }
  func.func @transform_3(%arg0: i32, %arg1: i32) -> (i32, i32) {
    %c0_i32 = arith.constant 0 : i32
    %c0_i32_0 = arith.constant 0 : i32
    %c0_i32_1 = arith.constant 0 : i32
    return %c0_i32, %c0_i32_0 : i32, i32
  }
  func.func @transform_4(%arg0: i32, %arg1: i32) -> (i32, i32) {
    %c0_i32 = arith.constant 0 : i32
    %c0_i32_0 = arith.constant 0 : i32
    %c0_i32_1 = arith.constant 0 : i32
    return %c0_i32, %c0_i32_0 : i32, i32
  }
  func.func @transform_5(%arg0: i32, %arg1: i32) -> (i32, i32) {
    %c0_i32 = arith.constant 0 : i32
    %c0_i32_0 = arith.constant 0 : i32
    %c0_i32_1 = arith.constant 0 : i32
    return %c0_i32, %c0_i32_0 : i32, i32
  }
  func.func @transform_6(%arg0: i32, %arg1: i32) -> (i32, i32) {
    %c0_i32 = arith.constant 0 : i32
    %c0_i32_0 = arith.constant 0 : i32
    %c0_i32_1 = arith.constant 0 : i32
    return %c0_i32, %c0_i32_0 : i32, i32
  }
  func.func @transform_7(%arg0: i32, %arg1: i32) -> (i32, i32, i32) {
    %c0_i32 = arith.constant 0 : i32
    %c0_i32_0 = arith.constant 0 : i32
    return %arg0, %arg1, %c0_i32 : i32, i32, i32
  }
}

</mosaic_0001>

<llo_original>
// kernel: tpu_custom_call.1
$region0: #{tpu_custom_call.1}
  #allocation0 [shape = 'u32[]', space=smem, size = 0x4, offset = 0x4, fixed_abs, tag = 'smem constant byte address 0x4 - core index']
  #allocation1 [shape = 'u32[144,128]{1,0:T(1,128)}', space=vmem, size = 0x12000, scoped, tag = 'internal scratch']
  #allocation2 [shape = 'f32[16,32]{1,0:T(8,128)}', space=vmem, size = 0x2000, scoped, tag = 'scratch operand']
  #allocation3 [shape = 'f32[16,32]{1,0:T(8,128)}', space=vmem, size = 0x2000, scoped, tag = 'scratch operand']
  #allocation4 [shape = 'f32[8,32]{1,0:T(8,128)}', space=vmem, size = 0x1000, scoped, tag = 'scratch operand']
  %s0 = inlined_call_operand.hbm [shape: f32[2,8,32], index: 0, kind: input, shape index: {}]
  %s1 = inlined_call_operand.hbm [shape: f32[2,16,32], index: 1, kind: input, shape index: {}]
  %s2 = inlined_call_operand.hbm [shape: f32[32,32], index: 2, kind: input, shape index: {}]
  %s3 = inlined_call_operand.hbm [shape: f32[32,32], index: 3, kind: input, shape index: {}]
  %s4 = inlined_call_operand.hbm [shape: f32[32,32], index: 4, kind: input, shape index: {}]
  %s5 = inlined_call_operand.hbm [shape: f32[32,128], index: 5, kind: input, shape index: {}]
  %s6 = inlined_call_operand.vmem [shape: f32[1,128], index: 6, kind: input, shape index: {}]
  %s7 = inlined_call_operand.hbm [shape: f32[2,8,128], index: 7, kind: output, shape index: {}]
  %s8 = sld [smem:[#allocation0]]
  $region89: #{tpu_custom_call.1} parent=0
    _
  %s10 = ssub.s32 1, %s8
  %s11 = scalar_select 0, %s10, %s8
  $region1: #{tpu_custom_call.1} parent=0
    #allocation5 [shape = 'u8[8192]{0}', space=vmem, size = 0x2000, scoped, tag = 'input window, operand 0']
    #allocation6 [shape = 's32[2]{0}', space=sflag, size = 0x8, scoped, tag = 'scoped memory for tpu_custom_call.1']
    #allocation7 [shape = 's32[2]{0}', space=sflag, size = 0x8, scoped, tag = 'scoped memory for tpu_custom_call.1']
    #allocation8 [shape = 'u8[16384]{0}', space=vmem, size = 0x4000, scoped, tag = 'input window, operand 1']
    #allocation9 [shape = 's32[2]{0}', space=sflag, size = 0x8, scoped, tag = 'scoped memory for tpu_custom_call.1']
    #allocation10 [shape = 'u8[16384]{0}', space=vmem, size = 0x4000, scoped, tag = 'input window, operand 2, single buffered']
    #allocation11 [shape = 'u8[16384]{0}', space=vmem, size = 0x4000, scoped, tag = 'input window, operand 3, single buffered']
    #allocation12 [shape = 's32[1]{0}', space=sflag, size = 0x4, scoped, tag = 'scoped memory for tpu_custom_call.1']
    #allocation13 [shape = 'u8[16384]{0}', space=vmem, size = 0x4000, scoped, tag = 'input window, operand 4, single buffered']
    #allocation14 [shape = 'u8[16384]{0}', space=vmem, size = 0x4000, scoped, tag = 'input window, operand 5, single buffered']
    #allocation15 [shape = 's32[1]{0}', space=sflag, size = 0x4, scoped, tag = 'scoped memory for tpu_custom_call.1']
    #allocation16 [shape = 'u8[8192]{0}', space=vmem, size = 0x2000, scoped, tag = 'output window, operand 0']
    %12 = vsyncpa [#allocation6], 0
    %s13 = scalar_lea.sflag [#allocation6], 1
    %14 = vsyncpa %s13, 0
    %15 = vsyncpa [#allocation9], 0
    %s16 = scalar_lea.sflag [#allocation9], 1
    %17 = vsyncpa %s16, 0
    %18 = vsyncpa [#allocation12], 0
    %19 = vsyncpa [#allocation15], 0
    %20 = vsyncpa [#allocation7], 0
    %s21 = scalar_lea.sflag [#allocation7], 1
    %22 = vsyncpa %s21, 0
    loop: start=0, step=1, limit=4
    $region2: #{tpu_custom_call.1} parent=1 // loop_pre_header
      _
    $region3: #{tpu_custom_call.1} parent=1 // loop_header
      %s24 = sphi 0, %s28
      %p25 = scmp.ge.s32.totalorder %s24, 4
      %s31 = sphi 0, %s43
      %s32 = sphi 0, %s39
      %s33 = sphi 0, %s31
      %s34 = sphi 0, %s32
      %s35 = sphi 0, %s33
      %s36 = sphi 0, %s34
      %s48 = sphi 0, %s50
      %s51 = sphi 0, %s48
      %s52 = sphi 0, %s51
      %s68 = sphi 0, %s52
      %s74 = sphi 0, %s76
      %s77 = sphi 0, %s74
      %s78 = sphi 0, %s77
      %s94 = sphi 0, %s78
      %s98 = sphi 0, %s98
      %s100 = sphi 0, %s98
      %s101 = sphi 0, %s100
      %s115 = sphi 0, %s101
      %s119 = sphi 0, %s119
      %s121 = sphi 0, %s119
      %s122 = sphi 0, %s121
      %s136 = sphi 0, %s122
      %s140 = sphi 0, %s140
      %s142 = sphi 0, %s140
      %s143 = sphi 0, %s142
      %s157 = sphi 0, %s143
      %s161 = sphi 0, %s161
      %s163 = sphi 0, %s161
      %s164 = sphi 0, %s163
      %s178 = sphi 0, %s164
      %s182 = sphi 0, %s182
      %s184 = sphi 0, %s182
      %s185 = sphi 0, %s184
      %s199 = sphi 0, %s185
      %s207 = sphi 0, %s209
      %s210 = sphi 0, %s207
      %s211 = sphi 0, %s210
      %s227 = sphi 0, %s211
    $region4: #{tpu_custom_call.1} parent=1 // loop_header_branch
      %27 = sbr.rel (%p25) target = $region8
    $region5: #{tpu_custom_call.1} parent=1 // loop_body
      %s29 = ssub.s32 %s24, 1
      %s30 = ssub.s32 %s24, 2
      %s37 = sadd.s32 1, %s32
      %p38 = scmp.ge.s32.totalorder %s37, 1
      %s39 = scalar_select %p38, 0, %s37
      %s40 = sadd.s32 1, %s31
      %s41 = scalar_select %p38, %s40, %s31
      %p42 = scmp.ge.s32.totalorder %s41, 2
      %s43 = scalar_select %p42, 0, %s41
      %s44 = ssub.s32 %s31, %s43
      %s45 = ssub.s32 %s32, %s39
      %s46 = sor.u32 %s44, %s45
      %p47 = scmp.eq.s32.totalorder %s46, 0
      %s49 = sadd.s32 %s48, 1
      %s50 = scalar_select %p47, %s48, %s49
      %p53 = pneg %p47
      %p54 = scmp.eq.s32.totalorder %s24, 1
      %p55 = por %p53, %p54
      %p56 = scmp.ne.s32.totalorder %s48, %s51
      %p57 = scmp.eq.s32.totalorder %s24, 0
      %p58 = por %p56, %p57
      %p59 = scmp.ne.s32.totalorder %s48, %s51
      %p60 = scmp.eq.s32.totalorder %s29, 1
      %p61 = por %p59, %p60
      %p62 = scmp.ne.s32.totalorder %s51, %s52
      %p63 = scmp.eq.s32.totalorder %s29, 0
      %p64 = por %p62, %p63
      %p65 = scmp.ne.s32.totalorder %s51, %s52
      %p66 = scmp.eq.s32.totalorder %s30, 1
      %p67 = por %p65, %p66
      %p69 = scmp.ne.s32.totalorder %s52, %s68
      %p70 = scmp.eq.s32.totalorder %s30, 0
      %p71 = por %p69, %p70
      %s72 = ssub.s32 %s31, %s43
      %p73 = scmp.eq.s32.totalorder %s72, 0
      %s75 = sadd.s32 %s74, 1
      %s76 = scalar_select %p73, %s74, %s75
      %p79 = pneg %p73
      %p80 = scmp.eq.s32.totalorder %s24, 1
      %p81 = por %p79, %p80
      %p82 = scmp.ne.s32.totalorder %s74, %s77
      %p83 = scmp.eq.s32.totalorder %s24, 0
      %p84 = por %p82, %p83
      %p85 = scmp.ne.s32.totalorder %s74, %s77
      %p86 = scmp.eq.s32.totalorder %s29, 1
      %p87 = por %p85, %p86
      %p88 = scmp.ne.s32.totalorder %s77, %s78
      %p89 = scmp.eq.s32.totalorder %s29, 0
      %p90 = por %p88, %p89
      %p91 = scmp.ne.s32.totalorder %s77, %s78
      %p92 = scmp.eq.s32.totalorder %s30, 1
      %p93 = por %p91, %p92
      %p95 = scmp.ne.s32.totalorder %s78, %s94
      %p96 = scmp.eq.s32.totalorder %s30, 0
      %p97 = por %p95, %p96
      %s99 = sadd.s32 %s98, 1
      %p102 = scmp.eq.s32.totalorder %s24, 1
      %p103 = scmp.ne.s32.totalorder %s98, %s100
      %p104 = scmp.eq.s32.totalorder %s24, 0
      %p105 = por %p103, %p104
      %p106 = scmp.ne.s32.totalorder %s98, %s100
      %p107 = scmp.eq.s32.totalorder %s29, 1
      %p108 = por %p106, %p107
      %p109 = scmp.ne.s32.totalorder %s100, %s101
      %p110 = scmp.eq.s32.totalorder %s29, 0
      %p111 = por %p109, %p110
      %p112 = scmp.ne.s32.totalorder %s100, %s101
      %p113 = scmp.eq.s32.totalorder %s30, 1
      %p114 = por %p112, %p113
      %p116 = scmp.ne.s32.totalorder %s101, %s115
      %p117 = scmp.eq.s32.totalorder %s30, 0
      %p118 = por %p116, %p117
      %s120 = sadd.s32 %s119, 1
      %p123 = scmp.eq.s32.totalorder %s24, 1
      %p124 = scmp.ne.s32.totalorder %s119, %s121
      %p125 = scmp.eq.s32.totalorder %s24, 0
      %p126 = por %p124, %p125
      %p127 = scmp.ne.s32.totalorder %s119, %s121
      %p128 = scmp.eq.s32.totalorder %s29, 1
      %p129 = por %p127, %p128
      %p130 = scmp.ne.s32.totalorder %s121, %s122
      %p131 = scmp.eq.s32.totalorder %s29, 0
      %p132 = por %p130, %p131
      %p133 = scmp.ne.s32.totalorder %s121, %s122
      %p134 = scmp.eq.s32.totalorder %s30, 1
      %p135 = por %p133, %p134
      %p137 = scmp.ne.s32.totalorder %s122, %s136
      %p138 = scmp.eq.s32.totalorder %s30, 0
      %p139 = por %p137, %p138
      %s141 = sadd.s32 %s140, 1
      %p144 = scmp.eq.s32.totalorder %s24, 1
      %p145 = scmp.ne.s32.totalorder %s140, %s142
      %p146 = scmp.eq.s32.totalorder %s24, 0
      %p147 = por %p145, %p146
      %p148 = scmp.ne.s32.totalorder %s140, %s142
      %p149 = scmp.eq.s32.totalorder %s29, 1
      %p150 = por %p148, %p149
      %p151 = scmp.ne.s32.totalorder %s142, %s143
      %p152 = scmp.eq.s32.totalorder %s29, 0
      %p153 = por %p151, %p152
      %p154 = scmp.ne.s32.totalorder %s142, %s143
      %p155 = scmp.eq.s32.totalorder %s30, 1
      %p156 = por %p154, %p155
      %p158 = scmp.ne.s32.totalorder %s143, %s157
      %p159 = scmp.eq.s32.totalorder %s30, 0
      %p160 = por %p158, %p159
      %s162 = sadd.s32 %s161, 1
      %p165 = scmp.eq.s32.totalorder %s24, 1
      %p166 = scmp.ne.s32.totalorder %s161, %s163
      %p167 = scmp.eq.s32.totalorder %s24, 0
      %p168 = por %p166, %p167
      %p169 = scmp.ne.s32.totalorder %s161, %s163
      %p170 = scmp.eq.s32.totalorder %s29, 1
      %p171 = por %p169, %p170
      %p172 = scmp.ne.s32.totalorder %s163, %s164
      %p173 = scmp.eq.s32.totalorder %s29, 0
      %p174 = por %p172, %p173
      %p175 = scmp.ne.s32.totalorder %s163, %s164
      %p176 = scmp.eq.s32.totalorder %s30, 1
      %p177 = por %p175, %p176
      %p179 = scmp.ne.s32.totalorder %s164, %s178
      %p180 = scmp.eq.s32.totalorder %s30, 0
      %p181 = por %p179, %p180
      %s183 = sadd.s32 %s182, 1
      %p186 = scmp.eq.s32.totalorder %s24, 1
      %p187 = scmp.ne.s32.totalorder %s182, %s184
      %p188 = scmp.eq.s32.totalorder %s24, 0
      %p189 = por %p187, %p188
      %p190 = scmp.ne.s32.totalorder %s182, %s184
      %p191 = scmp.eq.s32.totalorder %s29, 1
      %p192 = por %p190, %p191
      %p193 = scmp.ne.s32.totalorder %s184, %s185
      %p194 = scmp.eq.s32.totalorder %s29, 0
      %p195 = por %p193, %p194
      %p196 = scmp.ne.s32.totalorder %s184, %s185
      %p197 = scmp.eq.s32.totalorder %s30, 1
      %p198 = por %p196, %p197
      %p200 = scmp.ne.s32.totalorder %s185, %s199
      %p201 = scmp.eq.s32.totalorder %s30, 0
      %p202 = por %p200, %p201
      %s203 = ssub.s32 %s31, %s43
      %s204 = ssub.s32 %s32, %s39
      %s205 = sor.u32 %s203, %s204
      %p206 = scmp.eq.s32.totalorder %s205, 0
      %s208 = sadd.s32 %s207, 1
      %s209 = scalar_select %p206, %s207, %s208
      %p212 = pneg %p206
      %p213 = scmp.eq.s32.totalorder %s24, 1
      %p214 = por %p212, %p213
      %p215 = scmp.ne.s32.totalorder %s207, %s210
      %p216 = scmp.eq.s32.totalorder %s24, 0
      %p217 = por %p215, %p216
      %p218 = scmp.ne.s32.totalorder %s207, %s210
      %p219 = scmp.eq.s32.totalorder %s29, 1
      %p220 = por %p218, %p219
      %p221 = scmp.ne.s32.totalorder %s210, %s211
      %p222 = scmp.eq.s32.totalorder %s29, 0
      %p223 = por %p221, %p222
      %p224 = scmp.ne.s32.totalorder %s210, %s211
      %p225 = scmp.eq.s32.totalorder %s30, 1
      %p226 = por %p224, %p225
      %p228 = scmp.ne.s32.totalorder %s211, %s227
      %p229 = scmp.eq.s32.totalorder %s30, 0
      %p230 = por %p228, %p229
      %p231 = scmp.le.s32.totalorder 1, %s24
      %p232 = scmp.lt.s32.totalorder %s24, 3
      %p233 = pnand %p231, %p232
      %p234 = pneg %p233
      // Predicated region
      $region9: #{tpu_custom_call.1} parent=5 // pred_check
        _
      $region10: #{tpu_custom_call.1} parent=5 // pred_check_branch
        %236 = sbr.rel (%p233) target = $region12
      $region11: #{tpu_custom_call.1} parent=5 // pred_region
        %s237 = ssub.s32 %s24, 1
        // Predicated region
        $region13: #{tpu_custom_call.1} parent=11 // pred_check
          %p238 = pneg %p111
        $region14: #{tpu_custom_call.1} parent=11 // pred_check_branch
          %240 = sbr.rel (%p238) target = $region16
        $region15: #{tpu_custom_call.1} parent=11 // pred_region
          %s242 = ssub.s32 512, 512
          %243 = vsyncadd [#allocation9], %s242
          %s244 = sshll.u32 [#allocation10], 4
          %s245 = int_to_ptr.vmem [resolvable:$true] %s244
          %250 = dma.hbm_to_vmem [thread:$0]  %s2, 512, %s245, [#allocation9], 128, 128, 8
        $region16: #{tpu_custom_call.1} parent=11 // pred_fallthru
          _
        // Predicated region
        $region17: #{tpu_custom_call.1} parent=11 // pred_check
          %p251 = pneg %p132
        $region18: #{tpu_custom_call.1} parent=11 // pred_check_branch
          %253 = sbr.rel (%p251) target = $region20
        $region19: #{tpu_custom_call.1} parent=11 // pred_region
          %s255 = ssub.s32 512, 512
          %256 = vsyncadd [#allocation12], %s255
          %s257 = sshll.u32 [#allocation11], 4
          %s258 = int_to_ptr.vmem [resolvable:$true] %s257
          %263 = dma.hbm_to_vmem [thread:$0]  %s3, 512, %s258, [#allocation12], 128, 128, 8
        $region20: #{tpu_custom_call.1} parent=11 // pred_fallthru
          _
        // Predicated region
        $region21: #{tpu_custom_call.1} parent=11 // pred_check
          %p264 = pneg %p153
        $region22: #{tpu_custom_call.1} parent=11 // pred_check_branch
          %266 = sbr.rel (%p264) target = $region24
        $region23: #{tpu_custom_call.1} parent=11 // pred_region
          %s268 = ssub.s32 512, 512
          %269 = vsyncadd [#allocation12], %s268
          %s270 = sshll.u32 [#allocation13], 4
          %s271 = int_to_ptr.vmem [resolvable:$true] %s270
          %276 = dma.hbm_to_vmem [thread:$0]  %s4, 512, %s271, [#allocation12], 128, 128, 8
        $region24: #{tpu_custom_call.1} parent=11 // pred_fallthru
          _
        // Predicated region
        $region25: #{tpu_custom_call.1} parent=11 // pred_check
          %p277 = pneg %p174
        $region26: #{tpu_custom_call.1} parent=11 // pred_check_branch
          %279 = sbr.rel (%p277) target = $region28
        $region27: #{tpu_custom_call.1} parent=11 // pred_region
          %s281 = ssub.s32 512, 512
          %282 = vsyncadd [#allocation15], %s281
          %s283 = sshll.u32 [#allocation14], 4
          %s284 = int_to_ptr.vmem [resolvable:$true] %s283
          %289 = dma.hbm_to_vmem [thread:$0]  %s5, 512, %s284, [#allocation15], 128, 128, 8
        $region28: #{tpu_custom_call.1} parent=11 // pred_fallthru
          _
        // Predicated region
        $region29: #{tpu_custom_call.1} parent=11 // pred_check
          %p290 = pneg %p195
        $region30: #{tpu_custom_call.1} parent=11 // pred_check_branch
          %292 = sbr.rel (%p290) target = $region32
        $region31: #{tpu_custom_call.1} parent=11 // pred_region
          _
        $region32: #{tpu_custom_call.1} parent=11 // pred_fallthru
          _
      $region12: #{tpu_custom_call.1} parent=5 // pred_fallthru
        _
      %p293 = scmp.lt.s32.totalorder %s24, 2
      // Predicated region
      $region33: #{tpu_custom_call.1} parent=5 // pred_check
        %p294 = pneg %p293
      $region34: #{tpu_custom_call.1} parent=5 // pred_check_branch
        %296 = sbr.rel (%p294) target = $region36
      $region35: #{tpu_custom_call.1} parent=5 // pred_region
        // Predicated region
        $region37: #{tpu_custom_call.1} parent=35 // pred_check
          %p297 = pneg %p58
        $region38: #{tpu_custom_call.1} parent=35 // pred_check_branch
          %299 = sbr.rel (%p297) target = $region40
        $region39: #{tpu_custom_call.1} parent=35 // pred_region
          %s300 = sand.u32 %s48, 1
          %s301 = scalar_lea.sflag [#allocation6], %s300
          %s302 = sand.u32 %s48, 1
          %s303 = smul.addr %s302, 8
          %s304 = scalar_lea.vmem [#allocation5], %s303
          %s306 = ssub.s32 128, 128
          %307 = vsyncadd %s301, %s306
          %s308 = sadd.s32 %s32, %s31
          %s309 = smul.addr %s308, 128
          %s310 = scalar_lea.hbm %s0, %s309
          %s312 = sshll.u32 %s304, 4
          %s313 = int_to_ptr.vmem [resolvable:$true] %s312
          %315 = dma.hbm_to_vmem [thread:$0]  %s310, 128, %s313, %s301
        $region40: #{tpu_custom_call.1} parent=35 // pred_fallthru
          _
        // Predicated region
        $region41: #{tpu_custom_call.1} parent=35 // pred_check
          %p316 = pneg %p84
        $region42: #{tpu_custom_call.1} parent=35 // pred_check_branch
          %318 = sbr.rel (%p316) target = $region44
        $region43: #{tpu_custom_call.1} parent=35 // pred_region
          %s319 = sand.u32 %s24, 1
          %s320 = scalar_lea.sflag [#allocation9], %s319
          %s321 = sand.u32 %s74, 1
          %s322 = smul.addr %s321, 16
          %s323 = scalar_lea.vmem [#allocation8], %s322
          %s325 = ssub.s32 256, 256
          %326 = vsyncadd %s320, %s325
          %s327 = smul.addr %s31, 2
          %s328 = smul.addr %s327, 128
          %s329 = scalar_lea.hbm %s1, %s328
          %s330 = sshll.u32 %s323, 4
          %s331 = int_to_ptr.vmem [resolvable:$true] %s330
          %336 = dma.hbm_to_vmem [thread:$0]  %s329, 256, %s331, %s320, 128, 128, 8
        $region44: #{tpu_custom_call.1} parent=35 // pred_fallthru
          _
      $region36: #{tpu_custom_call.1} parent=5 // pred_fallthru
        _
      %p337 = scmp.le.s32.totalorder 1, %s24
      %p338 = scmp.lt.s32.totalorder %s24, 3
      %p339 = pnand %p337, %p338
      %p340 = pneg %p339
      // Predicated region
      $region45: #{tpu_custom_call.1} parent=5 // pred_check
        _
      $region46: #{tpu_custom_call.1} parent=5 // pred_check_branch
        %342 = sbr.rel (%p339) target = $region48
      $region47: #{tpu_custom_call.1} parent=5 // pred_region
        %s343 = ssub.s32 %s24, 1
        %s344 = sand.u32 %s51, 1
        %s345 = scalar_lea.sflag [#allocation6], %s344
        %s346 = sand.u32 %s51, 1
        %s347 = smul.addr %s346, 8
        %s348 = scalar_lea.vmem [#allocation5], %s347
        // Predicated region
        $region49: #{tpu_custom_call.1} parent=47 // pred_check
          %p349 = pneg %p64
        $region50: #{tpu_custom_call.1} parent=47 // pred_check_branch
          %351 = sbr.rel (%p349) target = $region52
        $region51: #{tpu_custom_call.1} parent=47 // pred_region
          %352 = dma.done %s345, 128
        $region52: #{tpu_custom_call.1} parent=47 // pred_fallthru
          _
        %s353 = sand.u32 %s29, 1
        %s354 = scalar_lea.sflag [#allocation9], %s353
        %s355 = sand.u32 %s77, 1
        %s356 = smul.addr %s355, 16
        %s357 = scalar_lea.vmem [#allocation8], %s356
        // Predicated region
        $region53: #{tpu_custom_call.1} parent=47 // pred_check
          %p358 = pneg %p90
        $region54: #{tpu_custom_call.1} parent=47 // pred_check_branch
          %360 = sbr.rel (%p358) target = $region56
        $region55: #{tpu_custom_call.1} parent=47 // pred_region
          %361 = dma.done %s354, 256
        $region56: #{tpu_custom_call.1} parent=47 // pred_fallthru
          _
        // Predicated region
        $region57: #{tpu_custom_call.1} parent=47 // pred_check
          %p362 = pneg %p111
        $region58: #{tpu_custom_call.1} parent=47 // pred_check_branch
          %364 = sbr.rel (%p362) target = $region60
        $region59: #{tpu_custom_call.1} parent=47 // pred_region
          %365 = dma.done [#allocation9], 512
        $region60: #{tpu_custom_call.1} parent=47 // pred_fallthru
          _
        // Predicated region
        $region61: #{tpu_custom_call.1} parent=47 // pred_check
          %p366 = pneg %p132
        $region62: #{tpu_custom_call.1} parent=47 // pred_check_branch
          %368 = sbr.rel (%p366) target = $region64
        $region63: #{tpu_custom_call.1} parent=47 // pred_region
          %369 = dma.done [#allocation12], 512
        $region64: #{tpu_custom_call.1} parent=47 // pred_fallthru
          _
        // Predicated region
        $region65: #{tpu_custom_call.1} parent=47 // pred_check
          %p370 = pneg %p153
        $region66: #{tpu_custom_call.1} parent=47 // pred_check_branch
          %372 = sbr.rel (%p370) target = $region68
        $region67: #{tpu_custom_call.1} parent=47 // pred_region
          %373 = dma.done [#allocation12], 512
        $region68: #{tpu_custom_call.1} parent=47 // pred_fallthru
          _
        // Predicated region
        $region69: #{tpu_custom_call.1} parent=47 // pred_check
          %p374 = pneg %p174
        $region70: #{tpu_custom_call.1} parent=47 // pred_check_branch
          %376 = sbr.rel (%p374) target = $region72
        $region71: #{tpu_custom_call.1} parent=47 // pred_region
          %377 = dma.done [#allocation15], 512
        $region72: #{tpu_custom_call.1} parent=47 // pred_fallthru
          _
        %s378 = sand.u32 %s51, 1
        %s379 = scalar_lea.sflag [#allocation6], %s378
        %s380 = sand.u32 %s51, 1
        %s381 = smul.addr %s380, 8
        %s382 = scalar_lea.vmem [#allocation5], %s381
        %p383 = pneg %p64
        %p384 = pneg %p61
        %s385 = sand.u32 %s29, 1
        %s386 = scalar_lea.sflag [#allocation9], %s385
        %s387 = sand.u32 %s77, 1
        %s388 = smul.addr %s387, 16
        %s389 = scalar_lea.vmem [#allocation8], %s388
        %p390 = pneg %p90
        %p391 = pneg %p87
        %p392 = pneg %p111
        %p393 = pneg %p108
        %p394 = pneg %p132
        %p395 = pneg %p129
        %p396 = pneg %p153
        %p397 = pneg %p150
        %p398 = pneg %p174
        %p399 = pneg %p171
        %p400 = pneg %p195
        %p401 = pneg %p192
        %p402 = pneg %p223
        %p403 = pneg %p220
        %s404 = sand.u32 %s210, 1
        %s405 = scalar_lea.sflag [#allocation7], %s404
        %s406 = sand.u32 %s210, 1
        %s407 = smul.addr %s406, 8
        %s408 = scalar_lea.vmem [#allocation16], %s407
        %p409 = scmp.eq.s32.totalorder %s34, 0
        // Predicated region
        $region73: #{tpu_custom_call.1} parent=47 // pred_check
          %p410 = pneg %p409
        $region74: #{tpu_custom_call.1} parent=47 // pred_check_branch
          %412 = sbr.rel (%p410) target = $region76
        $region75: #{tpu_custom_call.1} parent=47 // pred_region
          %v413 = vld [vmem:[%s357] sm:$0xff]
          %v414 = vld [vmem:[%s357 + $0x8] sm:$0xff]
          %v415 = vld [vmem:[#allocation11] sm:$0xff]
          %v416 = vld [vmem:[#allocation11 + $0x8] sm:$0xff]
          %v417 = vld [vmem:[#allocation11 + $0x10] sm:$0xff]
          %v418 = vld [vmem:[#allocation11 + $0x18] sm:$0xff]
          %vm419 = vcmask 261120
          %v421 = vsel %vm419, %v413, 0
          %v424 = vsel %vm419, %v414, 0
          %426 = vmatprep.subr.mxu0 0.0
          %427 = vmatpush1.msra.mxu0 %v415
          %428 = vmatprep.subr.mxu0 0.0
          %429 = vmatpush1.msra.mxu0 %v416
          %430 = vmatprep.subr.mxu0 0.0
          %431 = vmatpush1.msra.mxu0 %v417
          %432 = vmatprep.subr.mxu0 0.0
          %433 = vmatpush1.msra.mxu0 %v418
          %434 = vmatprep.subr.mxu0 0.0
          %435 = vmatpush1.msra.mxu0 0.0
          %436 = vmatprep.subr.mxu0 0.0
          %437 = vmatpush1.msra.mxu0 0.0
          %438 = vmatprep.subr.mxu0 0.0
          %439 = vmatpush1.msra.mxu0 0.0
          %440 = vmatprep.subr.mxu0 0.0
          %441 = vmatpush1.msra.mxu0 0.0
          %442 = vmatprep.subr.mxu0 0.0
          %443 = vmatpush1.msra.mxu0 0.0
          %444 = vmatprep.subr.mxu0 0.0
          %445 = vmatpush1.msra.mxu0 0.0
          %446 = vmatprep.subr.mxu0 0.0
          %447 = vmatpush1.msra.mxu0 0.0
          %448 = vmatprep.subr.mxu0 0.0
          %449 = vmatpush1.msra.mxu0 0.0
          %450 = vmatprep.subr.mxu0 0.0
          %451 = vmatpush1.msra.mxu0 0.0
          %452 = vmatprep.subr.mxu0 0.0
          %453 = vmatpush1.msra.mxu0 0.0
          %454 = vmatprep.subr.mxu0 0.0
          %455 = vmatpush1.msra.mxu0 0.0
          %456 = vmatprep.subr.mxu0 0.0
          %457 = vmatpush1.msra.mxu0 0.0
          %458 = vmatprep.subr.mxu0 0.0
          %459 = vmatpush1.msra.mxu0 0.0
          %460 = vmatprep.subr.mxu0 0.0
          %461 = vmatpush1.msra.mxu0 0.0
          %462 = vmatprep.subr.mxu0 0.0
          %463 = vmatpush1.msra.mxu0 0.0
          %464 = vmatprep.subr.mxu0 0.0
          %465 = vmatpush1.msra.mxu0 0.0
          %466 = vmatprep.subr.mxu0 0.0
          %467 = vmatpush1.msra.mxu0 0.0
          %468 = vmatprep.subr.mxu0 0.0
          %469 = vmatpush1.msra.mxu0 0.0
          %470 = vmatprep.subr.mxu0 0.0
          %471 = vmatpush1.msra.mxu0 0.0
          %472 = vmatprep.subr.mxu0 0.0
          %473 = vmatpush1.msra.mxu0 0.0
          %474 = vmatprep.subr.mxu0 0.0
          %475 = vmatpush1.msra.mxu0 0.0
          %476 = vmatprep.subr.mxu0 0.0
          %477 = vmatpush1.msra.mxu0 0.0
          %478 = vmatprep.subr.mxu0 0.0
          %479 = vmatpush1.msra.mxu0 0.0
          %480 = vmatprep.subr.mxu0 0.0
          %481 = vmatpush1.msra.mxu0 0.0
          %482 = vmatprep.subr.mxu0 0.0
          %483 = vmatpush1.msra.mxu0 0.0
          %484 = vmatprep.subr.mxu0 0.0
          %485 = vmatpush1.msra.mxu0 0.0
          %486 = vmatprep.subr.mxu0 0.0
          %487 = vmatpush1.msra.mxu0 0.0
          %488 = vmatprep.subr.mxu0 0.0
          %489 = vmatpush1.msra.mxu0 0.0
          %490 = vmatprep.mubr.f32.mxu0 0.0
          %491 = vmatmul.mubr.f32.gmra.mrb[0].mxu0 %v421
          %v492 = vpop.f32.mrb[0].mxu0
          %v493 = vadd.f32 0.0, %v492
          %v494 = vpop.f32.mrb[0].mxu0
          %495 = vmatprep.mubr.f32.mxu0 0.0
          %496 = vmatmul.mubr.f32.gmra.mrb[0].mxu0 %v424
          %v497 = vpop.f32.mrb[0].mxu0
          %v498 = vadd.f32 0.0, %v497
          %v499 = vpop.f32.mrb[0].mxu0
          %500 = vdwg.mxu0
          %v501 = vld [vmem:[#allocation13] sm:$0xff]
          %v502 = vld [vmem:[#allocation13 + $0x8] sm:$0xff]
          %v503 = vld [vmem:[#allocation13 + $0x10] sm:$0xff]
          %v504 = vld [vmem:[#allocation13 + $0x18] sm:$0xff]
          %505 = vmatprep.subr.mxu0 0.0
          %506 = vmatpush1.msra.mxu0 %v501
          %507 = vmatprep.subr.mxu0 0.0
          %508 = vmatpush1.msra.mxu0 %v502
          %509 = vmatprep.subr.mxu0 0.0
          %510 = vmatpush1.msra.mxu0 %v503
          %511 = vmatprep.subr.mxu0 0.0
          %512 = vmatpush1.msra.mxu0 %v504
          %513 = vmatprep.subr.mxu0 0.0
          %514 = vmatpush1.msra.mxu0 0.0
          %515 = vmatprep.subr.mxu0 0.0
          %516 = vmatpush1.msra.mxu0 0.0
          %517 = vmatprep.subr.mxu0 0.0
          %518 = vmatpush1.msra.mxu0 0.0
          %519 = vmatprep.subr.mxu0 0.0
          %520 = vmatpush1.msra.mxu0 0.0
          %521 = vmatprep.subr.mxu0 0.0
          %522 = vmatpush1.msra.mxu0 0.0
          %523 = vmatprep.subr.mxu0 0.0
          %524 = vmatpush1.msra.mxu0 0.0
          %525 = vmatprep.subr.mxu0 0.0
          %526 = vmatpush1.msra.mxu0 0.0
          %527 = vmatprep.subr.mxu0 0.0
          %528 = vmatpush1.msra.mxu0 0.0
          %529 = vmatprep.subr.mxu0 0.0
          %530 = vmatpush1.msra.mxu0 0.0
          %531 = vmatprep.subr.mxu0 0.0
          %532 = vmatpush1.msra.mxu0 0.0
          %533 = vmatprep.subr.mxu0 0.0
          %534 = vmatpush1.msra.mxu0 0.0
          %535 = vmatprep.subr.mxu0 0.0
          %536 = vmatpush1.msra.mxu0 0.0
          %537 = vmatprep.subr.mxu0 0.0
          %538 = vmatpush1.msra.mxu0 0.0
          %539 = vmatprep.subr.mxu0 0.0
          %540 = vmatpush1.msra.mxu0 0.0
          %541 = vmatprep.subr.mxu0 0.0
          %542 = vmatpush1.msra.mxu0 0.0
          %543 = vmatprep.subr.mxu0 0.0
          %544 = vmatpush1.msra.mxu0 0.0
          %545 = vmatprep.subr.mxu0 0.0
          %546 = vmatpush1.msra.mxu0 0.0
          %547 = vmatprep.subr.mxu0 0.0
          %548 = vmatpush1.msra.mxu0 0.0
          %549 = vmatprep.subr.mxu0 0.0
          %550 = vmatpush1.msra.mxu0 0.0
          %551 = vmatprep.subr.mxu0 0.0
          %552 = vmatpush1.msra.mxu0 0.0
          %553 = vmatprep.subr.mxu0 0.0
          %554 = vmatpush1.msra.mxu0 0.0
          %555 = vmatprep.subr.mxu0 0.0
          %556 = vmatpush1.msra.mxu0 0.0
          %557 = vmatprep.subr.mxu0 0.0
          %558 = vmatpush1.msra.mxu0 0.0
          %559 = vmatprep.subr.mxu0 0.0
          %560 = vmatpush1.msra.mxu0 0.0
          %561 = vmatprep.subr.mxu0 0.0
          %562 = vmatpush1.msra.mxu0 0.0
          %563 = vmatprep.subr.mxu0 0.0
          %564 = vmatpush1.msra.mxu0 0.0
          %565 = vmatprep.subr.mxu0 0.0
          %566 = vmatpush1.msra.mxu0 0.0
          %567 = vmatprep.subr.mxu0 0.0
          %568 = vmatpush1.msra.mxu0 0.0
          %569 = vmatprep.mubr.f32.mxu0 0.0
          %570 = vmatmul.mubr.f32.gmra.mrb[0].mxu0 %v421
          %v571 = vpop.f32.mrb[0].mxu0
          %v572 = vadd.f32 0.0, %v571
          %v573 = vpop.f32.mrb[0].mxu0
          %574 = vmatprep.mubr.f32.mxu0 0.0
          %575 = vmatmul.mubr.f32.gmra.mrb[0].mxu0 %v424
          %v576 = vpop.f32.mrb[0].mxu0
          %v577 = vadd.f32 0.0, %v576
          %v578 = vpop.f32.mrb[0].mxu0
          %579 = vdwg.mxu0
          %580 = vst.msk [vmem:[#allocation2] sm:$0xff] %vm419, %v493
          %581 = vst.msk [vmem:[#allocation2 + $0x8] sm:$0xff] %vm419, %v498
          %582 = vst.msk [vmem:[#allocation3] sm:$0xff] %vm419, %v572
          %583 = vst.msk [vmem:[#allocation3 + $0x8] sm:$0xff] %vm419, %v577
        $region76: #{tpu_custom_call.1} parent=47 // pred_fallthru
          _
        %v584 = vld [vmem:[%s348] sm:$0xff]
        %v585 = vld [vmem:[#allocation10] sm:$0xff]
        %v586 = vld [vmem:[#allocation10 + $0x8] sm:$0xff]
        %v587 = vld [vmem:[#allocation10 + $0x10] sm:$0xff]
        %v588 = vld [vmem:[#allocation10 + $0x18] sm:$0xff]
        %vm589 = vcmask 261120
        %v591 = vsel %vm589, %v584, 0
        %593 = vmatprep.subr.mxu0 0.0
        %594 = vmatpush1.msra.mxu0 %v585
        %595 = vmatprep.subr.mxu0 0.0
        %596 = vmatpush1.msra.mxu0 %v586
        %597 = vmatprep.subr.mxu0 0.0
        %598 = vmatpush1.msra.mxu0 %v587
        %599 = vmatprep.subr.mxu0 0.0
        %600 = vmatpush1.msra.mxu0 %v588
        %601 = vmatprep.subr.mxu0 0.0
        %602 = vmatpush1.msra.mxu0 0.0
        %603 = vmatprep.subr.mxu0 0.0
        %604 = vmatpush1.msra.mxu0 0.0
        %605 = vmatprep.subr.mxu0 0.0
        %606 = vmatpush1.msra.mxu0 0.0
        %607 = vmatprep.subr.mxu0 0.0
        %608 = vmatpush1.msra.mxu0 0.0
        %609 = vmatprep.subr.mxu0 0.0
        %610 = vmatpush1.msra.mxu0 0.0
        %611 = vmatprep.subr.mxu0 0.0
        %612 = vmatpush1.msra.mxu0 0.0
        %613 = vmatprep.subr.mxu0 0.0
        %614 = vmatpush1.msra.mxu0 0.0
        %615 = vmatprep.subr.mxu0 0.0
        %616 = vmatpush1.msra.mxu0 0.0
        %617 = vmatprep.subr.mxu0 0.0
        %618 = vmatpush1.msra.mxu0 0.0
        %619 = vmatprep.subr.mxu0 0.0
        %620 = vmatpush1.msra.mxu0 0.0
        %621 = vmatprep.subr.mxu0 0.0
        %622 = vmatpush1.msra.mxu0 0.0
        %623 = vmatprep.subr.mxu0 0.0
        %624 = vmatpush1.msra.mxu0 0.0
        %625 = vmatprep.subr.mxu0 0.0
        %626 = vmatpush1.msra.mxu0 0.0
        %627 = vmatprep.subr.mxu0 0.0
        %628 = vmatpush1.msra.mxu0 0.0
        %629 = vmatprep.subr.mxu0 0.0
        %630 = vmatpush1.msra.mxu0 0.0
        %631 = vmatprep.subr.mxu0 0.0
        %632 = vmatpush1.msra.mxu0 0.0
        %633 = vmatprep.subr.mxu0 0.0
        %634 = vmatpush1.msra.mxu0 0.0
        %635 = vmatprep.subr.mxu0 0.0
        %636 = vmatpush1.msra.mxu0 0.0
        %637 = vmatprep.subr.mxu0 0.0
        %638 = vmatpush1.msra.mxu0 0.0
        %639 = vmatprep.subr.mxu0 0.0
        %640 = vmatpush1.msra.mxu0 0.0
        %641 = vmatprep.subr.mxu0 0.0
        %642 = vmatpush1.msra.mxu0 0.0
        %643 = vmatprep.subr.mxu0 0.0
        %644 = vmatpush1.msra.mxu0 0.0
        %645 = vmatprep.subr.mxu0 0.0
        %646 = vmatpush1.msra.mxu0 0.0
        %647 = vmatprep.subr.mxu0 0.0
        %648 = vmatpush1.msra.mxu0 0.0
        %649 = vmatprep.subr.mxu0 0.0
        %650 = vmatpush1.msra.mxu0 0.0
        %651 = vmatprep.subr.mxu0 0.0
        %652 = vmatpush1.msra.mxu0 0.0
        %653 = vmatprep.subr.mxu0 0.0
        %654 = vmatpush1.msra.mxu0 0.0
        %655 = vmatprep.subr.mxu0 0.0
        %656 = vmatpush1.msra.mxu0 0.0
        %657 = vmatprep.mubr.f32.mxu0 0.0
        %658 = vmatmul.mubr.f32.gmra.mrb[0].mxu0 %v591
        %v659 = vpop.f32.mrb[0].mxu0
        %v660 = vadd.f32 0.0, %v659
        %v661 = vpop.f32.mrb[0].mxu0
        %662 = vdwg.mxu0
        %v663 = vld [vmem:[#allocation2] sm:$0xff]
        %v664 = vld [vmem:[#allocation2 + $0x8] sm:$0xff]
        %v665 = vld [vmem:[#allocation3] sm:$0xff]
        %v666 = vld [vmem:[#allocation3 + $0x8] sm:$0xff]
        %v667 = vlaneseq
        %v668 = vand.u32 %v667, 127
        %vm669 = vcmp.lt.s32.totalorder %v668, 12
        %vm670 = vcmask 130048
        %v672 = vsel %vm670, %v660, 0
        %v675 = vsel %vm670, %v663, 0
        %v678 = vsel %vm670, %v664, 0
        %680 = vmatprep.subr.mxu0 0.0
        %681 = vmatpush1.xpose.msra.mxu0 %v675
        %682 = vmatprep.subr.mxu0 0.0
        %683 = vmatpush1.xpose.msra.mxu0 %v678
        %684 = vmatprep.subr.mxu0 0.0
        %685 = vmatpush1.xpose.msra.mxu0 0.0
        %686 = vmatprep.subr.mxu0 0.0
        %687 = vmatpush1.xpose.msra.mxu0 0.0
        %688 = vmatprep.subr.mxu0 0.0
        %689 = vmatpush1.xpose.msra.mxu0 0.0
        %690 = vmatprep.subr.mxu0 0.0
        %691 = vmatpush1.xpose.msra.mxu0 0.0
        %692 = vmatprep.subr.mxu0 0.0
        %693 = vmatpush1.xpose.msra.mxu0 0.0
        %694 = vmatprep.subr.mxu0 0.0
        %695 = vmatpush1.xpose.msra.mxu0 0.0
        %696 = vmatprep.subr.mxu0 0.0
        %697 = vmatpush1.xpose.msra.mxu0 0.0
        %698 = vmatprep.subr.mxu0 0.0
        %699 = vmatpush1.xpose.msra.mxu0 0.0
        %700 = vmatprep.subr.mxu0 0.0
        %701 = vmatpush1.xpose.msra.mxu0 0.0
        %702 = vmatprep.subr.mxu0 0.0
        %703 = vmatpush1.xpose.msra.mxu0 0.0
        %704 = vmatprep.subr.mxu0 0.0
        %705 = vmatpush1.xpose.msra.mxu0 0.0
        %706 = vmatprep.subr.mxu0 0.0
        %707 = vmatpush1.xpose.msra.mxu0 0.0
        %708 = vmatprep.subr.mxu0 0.0
        %709 = vmatpush1.xpose.msra.mxu0 0.0
        %710 = vmatprep.subr.mxu0 0.0
        %711 = vmatpush1.xpose.msra.mxu0 0.0
        %712 = vmatprep.subr.mxu0 0.0
        %713 = vmatpush1.xpose.msra.mxu0 0.0
        %714 = vmatprep.subr.mxu0 0.0
        %715 = vmatpush1.xpose.msra.mxu0 0.0
        %716 = vmatprep.subr.mxu0 0.0
        %717 = vmatpush1.xpose.msra.mxu0 0.0
        %718 = vmatprep.subr.mxu0 0.0
        %719 = vmatpush1.xpose.msra.mxu0 0.0
        %720 = vmatprep.subr.mxu0 0.0
        %721 = vmatpush1.xpose.msra.mxu0 0.0
        %722 = vmatprep.subr.mxu0 0.0
        %723 = vmatpush1.xpose.msra.mxu0 0.0
        %724 = vmatprep.subr.mxu0 0.0
        %725 = vmatpush1.xpose.msra.mxu0 0.0
        %726 = vmatprep.subr.mxu0 0.0
        %727 = vmatpush1.xpose.msra.mxu0 0.0
        %728 = vmatprep.subr.mxu0 0.0
        %729 = vmatpush1.xpose.msra.mxu0 0.0
        %730 = vmatprep.subr.mxu0 0.0
        %731 = vmatpush1.xpose.msra.mxu0 0.0
        %732 = vmatprep.subr.mxu0 0.0
        %733 = vmatpush1.xpose.msra.mxu0 0.0
        %734 = vmatprep.subr.mxu0 0.0
        %735 = vmatpush1.xpose.msra.mxu0 0.0
        %736 = vmatprep.subr.mxu0 0.0
        %737 = vmatpush1.xpose.msra.mxu0 0.0
        %738 = vmatprep.subr.mxu0 0.0
        %739 = vmatpush1.xpose.msra.mxu0 0.0
        %740 = vmatprep.subr.mxu0 0.0
        %741 = vmatpush1.xpose.msra.mxu0 0.0
        %742 = vmatprep.subr.mxu0 0.0
        %743 = vmatpush1.xpose.msra.mxu0 0.0
        %744 = vmatprep.mubr.f32.mxu0 0.0
        %745 = vmatmul.mubr.f32.gmra.mrb[0].mxu0 %v672
        %v746 = vpop.f32.mrb[0].mxu0
        %v747 = vadd.f32 0.0, %v746
        %v748 = vpop.f32.mrb[0].mxu0
        %749 = vdwg.mxu0
        %v750 = vsel %vm669, %v747, -3e+38
        %v751 = vsel %vm670, %v750, -inf
        %752 = vmax.xlane.f32.xlu0 %v751
        %v753 = vpop.xlane.xlu0 %752
        %v754 = vsub.f32 %v750, %v753
        %v755 = vmul.f32 %v754, 1.442695
        %v756 = vpow.pop %v755
        %v757 = vsel %vm670, %v756, 0.0
        %758 = vadd.xlane.f32.xlu0 %v757
        %v759 = vpop.xlane.xlu0 %758
        %v760 = vrcp.pop %v759
        %v761 = vmul.f32 %v756, %v760
        %v763 = vsel %vm670, %v761, 0
        %765 = vmatprep.subr.mxu0 0.0
        %766 = vmatpush1.msra.mxu0 %v665
        %767 = vmatprep.subr.mxu0 0.0
        %768 = vmatpush1.msra.mxu0 %v666
        %769 = vmatprep.subr.mxu0 0.0
        %770 = vmatpush1.msra.mxu0 0.0
        %771 = vmatprep.subr.mxu0 0.0
        %772 = vmatpush1.msra.mxu0 0.0
        %773 = vmatprep.subr.mxu0 0.0
        %774 = vmatpush1.msra.mxu0 0.0
        %775 = vmatprep.subr.mxu0 0.0
        %776 = vmatpush1.msra.mxu0 0.0
        %777 = vmatprep.subr.mxu0 0.0
        %778 = vmatpush1.msra.mxu0 0.0
        %779 = vmatprep.subr.mxu0 0.0
        %780 = vmatpush1.msra.mxu0 0.0
        %781 = vmatprep.subr.mxu0 0.0
        %782 = vmatpush1.msra.mxu0 0.0
        %783 = vmatprep.subr.mxu0 0.0
        %784 = vmatpush1.msra.mxu0 0.0
        %785 = vmatprep.subr.mxu0 0.0
        %786 = vmatpush1.msra.mxu0 0.0
        %787 = vmatprep.subr.mxu0 0.0
        %788 = vmatpush1.msra.mxu0 0.0
        %789 = vmatprep.subr.mxu0 0.0
        %790 = vmatpush1.msra.mxu0 0.0
        %791 = vmatprep.subr.mxu0 0.0
        %792 = vmatpush1.msra.mxu0 0.0
        %793 = vmatprep.subr.mxu0 0.0
        %794 = vmatpush1.msra.mxu0 0.0
        %795 = vmatprep.subr.mxu0 0.0
        %796 = vmatpush1.msra.mxu0 0.0
        %797 = vmatprep.subr.mxu0 0.0
        %798 = vmatpush1.msra.mxu0 0.0
        %799 = vmatprep.subr.mxu0 0.0
        %800 = vmatpush1.msra.mxu0 0.0
        %801 = vmatprep.subr.mxu0 0.0
        %802 = vmatpush1.msra.mxu0 0.0
        %803 = vmatprep.subr.mxu0 0.0
        %804 = vmatpush1.msra.mxu0 0.0
        %805 = vmatprep.subr.mxu0 0.0
        %806 = vmatpush1.msra.mxu0 0.0
        %807 = vmatprep.subr.mxu0 0.0
        %808 = vmatpush1.msra.mxu0 0.0
        %809 = vmatprep.subr.mxu0 0.0
        %810 = vmatpush1.msra.mxu0 0.0
        %811 = vmatprep.subr.mxu0 0.0
        %812 = vmatpush1.msra.mxu0 0.0
        %813 = vmatprep.subr.mxu0 0.0
        %814 = vmatpush1.msra.mxu0 0.0
        %815 = vmatprep.subr.mxu0 0.0
        %816 = vmatpush1.msra.mxu0 0.0
        %817 = vmatprep.subr.mxu0 0.0
        %818 = vmatpush1.msra.mxu0 0.0
        %819 = vmatprep.subr.mxu0 0.0
        %820 = vmatpush1.msra.mxu0 0.0
        %821 = vmatprep.subr.mxu0 0.0
        %822 = vmatpush1.msra.mxu0 0.0
        %823 = vmatprep.subr.mxu0 0.0
        %824 = vmatpush1.msra.mxu0 0.0
        %825 = vmatprep.subr.mxu0 0.0
        %826 = vmatpush1.msra.mxu0 0.0
        %827 = vmatprep.subr.mxu0 0.0
        %828 = vmatpush1.msra.mxu0 0.0
        %829 = vmatprep.mubr.f32.mxu0 0.0
        %830 = vmatmul.mubr.f32.gmra.mrb[0].mxu0 %v763
        %v831 = vpop.f32.mrb[0].mxu0
        %v832 = vadd.f32 0.0, %v831
        %v833 = vpop.f32.mrb[0].mxu0
        %834 = vdwg.mxu0
        %835 = vst.msk [vmem:[#allocation4] sm:$0xff] %vm670, %v832
        %836 = vrot.lane.b32.xlu0 %v660, 112
        %v837 = vpop.permute.xlu0 %836
        %838 = vrot.lane.b32.xlu0 %v663, 112
        %v839 = vpop.permute.xlu0 %838
        %840 = vrot.lane.b32.xlu0 %v664, 112
        %v841 = vpop.permute.xlu0 %840
        %v842 = vsel %vm670, %v837, 0
        %v844 = vsel %vm670, %v839, 0
        %v846 = vsel %vm670, %v841, 0
        %848 = vmatprep.subr.mxu0 0.0
        %849 = vmatpush1.xpose.msra.mxu0 %v844
        %850 = vmatprep.subr.mxu0 0.0
        %851 = vmatpush1.xpose.msra.mxu0 %v846
        %852 = vmatprep.subr.mxu0 0.0
        %853 = vmatpush1.xpose.msra.mxu0 0.0
        %854 = vmatprep.subr.mxu0 0.0
        %855 = vmatpush1.xpose.msra.mxu0 0.0
        %856 = vmatprep.subr.mxu0 0.0
        %857 = vmatpush1.xpose.msra.mxu0 0.0
        %858 = vmatprep.subr.mxu0 0.0
        %859 = vmatpush1.xpose.msra.mxu0 0.0
        %860 = vmatprep.subr.mxu0 0.0
        %861 = vmatpush1.xpose.msra.mxu0 0.0
        %862 = vmatprep.subr.mxu0 0.0
        %863 = vmatpush1.xpose.msra.mxu0 0.0
        %864 = vmatprep.subr.mxu0 0.0
        %865 = vmatpush1.xpose.msra.mxu0 0.0
        %866 = vmatprep.subr.mxu0 0.0
        %867 = vmatpush1.xpose.msra.mxu0 0.0
        %868 = vmatprep.subr.mxu0 0.0
        %869 = vmatpush1.xpose.msra.mxu0 0.0
        %870 = vmatprep.subr.mxu0 0.0
        %871 = vmatpush1.xpose.msra.mxu0 0.0
        %872 = vmatprep.subr.mxu0 0.0
        %873 = vmatpush1.xpose.msra.mxu0 0.0
        %874 = vmatprep.subr.mxu0 0.0
        %875 = vmatpush1.xpose.msra.mxu0 0.0
        %876 = vmatprep.subr.mxu0 0.0
        %877 = vmatpush1.xpose.msra.mxu0 0.0
        %878 = vmatprep.subr.mxu0 0.0
        %879 = vmatpush1.xpose.msra.mxu0 0.0
        %880 = vmatprep.subr.mxu0 0.0
        %881 = vmatpush1.xpose.msra.mxu0 0.0
        %882 = vmatprep.subr.mxu0 0.0
        %883 = vmatpush1.xpose.msra.mxu0 0.0
        %884 = vmatprep.subr.mxu0 0.0
        %885 = vmatpush1.xpose.msra.mxu0 0.0
        %886 = vmatprep.subr.mxu0 0.0
        %887 = vmatpush1.xpose.msra.mxu0 0.0
        %888 = vmatprep.subr.mxu0 0.0
        %889 = vmatpush1.xpose.msra.mxu0 0.0
        %890 = vmatprep.subr.mxu0 0.0
        %891 = vmatpush1.xpose.msra.mxu0 0.0
        %892 = vmatprep.subr.mxu0 0.0
        %893 = vmatpush1.xpose.msra.mxu0 0.0
        %894 = vmatprep.subr.mxu0 0.0
        %895 = vmatpush1.xpose.msra.mxu0 0.0
        %896 = vmatprep.subr.mxu0 0.0
        %897 = vmatpush1.xpose.msra.mxu0 0.0
        %898 = vmatprep.subr.mxu0 0.0
        %899 = vmatpush1.xpose.msra.mxu0 0.0
        %900 = vmatprep.subr.mxu0 0.0
        %901 = vmatpush1.xpose.msra.mxu0 0.0
        %902 = vmatprep.subr.mxu0 0.0
        %903 = vmatpush1.xpose.msra.mxu0 0.0
        %904 = vmatprep.subr.mxu0 0.0
        %905 = vmatpush1.xpose.msra.mxu0 0.0
        %906 = vmatprep.subr.mxu0 0.0
        %907 = vmatpush1.xpose.msra.mxu0 0.0
        %908 = vmatprep.subr.mxu0 0.0
        %909 = vmatpush1.xpose.msra.mxu0 0.0
        %910 = vmatprep.subr.mxu0 0.0
        %911 = vmatpush1.xpose.msra.mxu0 0.0
        %912 = vmatprep.mubr.f32.mxu0 0.0
        %913 = vmatmul.mubr.f32.gmra.mrb[0].mxu0 %v842
        %v914 = vpop.f32.mrb[0].mxu0
        %v915 = vadd.f32 0.0, %v914
        %v916 = vpop.f32.mrb[0].mxu0
        %917 = vdwg.mxu0
        %v918 = vsel %vm669, %v915, -3e+38
        %v919 = vsel %vm670, %v918, -inf
        %920 = vmax.xlane.f32.xlu0 %v919
        %v921 = vpop.xlane.xlu0 %920
        %v922 = vsub.f32 %v918, %v921
        %v923 = vmul.f32 %v922, 1.442695
        %v924 = vpow.pop %v923
        %v925 = vsel %vm670, %v924, 0.0
        %926 = vadd.xlane.f32.xlu0 %v925
        %v927 = vpop.xlane.xlu0 %926
        %v928 = vrcp.pop %v927
        %v929 = vmul.f32 %v924, %v928
        %932 = vrot.lane.b32.xlu0 %v665, 112
        %v933 = vpop.permute.xlu0 %932
        %934 = vrot.lane.b32.xlu0 %v666, 112
        %v935 = vpop.permute.xlu0 %934
        %v939 = vsel %vm670, %v929, 0
        %941 = vmatprep.subr.mxu0 0.0
        %942 = vmatpush1.msra.mxu0 %v933
        %943 = vmatprep.subr.mxu0 0.0
        %944 = vmatpush1.msra.mxu0 %v935
        %945 = vmatprep.subr.mxu0 0.0
        %946 = vmatpush1.msra.mxu0 0.0
        %947 = vmatprep.subr.mxu0 0.0
        %948 = vmatpush1.msra.mxu0 0.0
        %949 = vmatprep.subr.mxu0 0.0
        %950 = vmatpush1.msra.mxu0 0.0
        %951 = vmatprep.subr.mxu0 0.0
        %952 = vmatpush1.msra.mxu0 0.0
        %953 = vmatprep.subr.mxu0 0.0
        %954 = vmatpush1.msra.mxu0 0.0
        %955 = vmatprep.subr.mxu0 0.0
        %956 = vmatpush1.msra.mxu0 0.0
        %957 = vmatprep.subr.mxu0 0.0
        %958 = vmatpush1.msra.mxu0 0.0
        %959 = vmatprep.subr.mxu0 0.0
        %960 = vmatpush1.msra.mxu0 0.0
        %961 = vmatprep.subr.mxu0 0.0
        %962 = vmatpush1.msra.mxu0 0.0
        %963 = vmatprep.subr.mxu0 0.0
        %964 = vmatpush1.msra.mxu0 0.0
        %965 = vmatprep.subr.mxu0 0.0
        %966 = vmatpush1.msra.mxu0 0.0
        %967 = vmatprep.subr.mxu0 0.0
        %968 = vmatpush1.msra.mxu0 0.0
        %969 = vmatprep.subr.mxu0 0.0
        %970 = vmatpush1.msra.mxu0 0.0
        %971 = vmatprep.subr.mxu0 0.0
        %972 = vmatpush1.msra.mxu0 0.0
        %973 = vmatprep.subr.mxu0 0.0
        %974 = vmatpush1.msra.mxu0 0.0
        %975 = vmatprep.subr.mxu0 0.0
        %976 = vmatpush1.msra.mxu0 0.0
        %977 = vmatprep.subr.mxu0 0.0
        %978 = vmatpush1.msra.mxu0 0.0
        %979 = vmatprep.subr.mxu0 0.0
        %980 = vmatpush1.msra.mxu0 0.0
        %981 = vmatprep.subr.mxu0 0.0
        %982 = vmatpush1.msra.mxu0 0.0
        %983 = vmatprep.subr.mxu0 0.0
        %984 = vmatpush1.msra.mxu0 0.0
        %985 = vmatprep.subr.mxu0 0.0
        %986 = vmatpush1.msra.mxu0 0.0
        %987 = vmatprep.subr.mxu0 0.0
        %988 = vmatpush1.msra.mxu0 0.0
        %989 = vmatprep.subr.mxu0 0.0
        %990 = vmatpush1.msra.mxu0 0.0
        %991 = vmatprep.subr.mxu0 0.0
        %992 = vmatpush1.msra.mxu0 0.0
        %993 = vmatprep.subr.mxu0 0.0
        %994 = vmatpush1.msra.mxu0 0.0
        %995 = vmatprep.subr.mxu0 0.0
        %996 = vmatpush1.msra.mxu0 0.0
        %997 = vmatprep.subr.mxu0 0.0
        %998 = vmatpush1.msra.mxu0 0.0
        %999 = vmatprep.subr.mxu0 0.0
        %1000 = vmatpush1.msra.mxu0 0.0
        %1001 = vmatprep.subr.mxu0 0.0
        %1002 = vmatpush1.msra.mxu0 0.0
        %1003 = vmatprep.subr.mxu0 0.0
        %1004 = vmatpush1.msra.mxu0 0.0
        %1005 = vmatprep.mubr.f32.mxu0 0.0
        %1006 = vmatmul.mubr.f32.gmra.mrb[0].mxu0 %v939
        %v1007 = vpop.f32.mrb[0].mxu0
        %v1008 = vadd.f32 0.0, %v1007
        %v1009 = vpop.f32.mrb[0].mxu0
        %1010 = vdwg.mxu0
        %1012 = vrot.lane.b32.xlu0 %v1008, 16
        %v1013 = vpop.permute.xlu0 %1012
        %vm1015 = vcmask 261248
        %1016 = vst.msk [vmem:[#allocation4] sm:$0xff] %vm1015, %v1013
        %v1017 = vld [vmem:[#allocation4] sm:$0xff]
        %v1018 = vld [vmem:[#allocation14] sm:$0xff]
        %v1019 = vld [vmem:[#allocation14 + $0x8] sm:$0xff]
        %v1020 = vld [vmem:[#allocation14 + $0x10] sm:$0xff]
        %v1021 = vld [vmem:[#allocation14 + $0x18] sm:$0xff]
        %v1022 = vld [vmem:[%s6] sm:$0x1]
        %v1024 = vlaneseq
        %v1025 = vshrl.u32 %v1024, 7
        %v1026 = vsub.s32 0, %v1025
        %v1027 = vrot.slane %v1022, %v1026
        %v1030 = vsel %vm589, %v1017, 0
        %1032 = vmatprep.subr.mxu0 0.0
        %1033 = vmatpush1.msra.mxu0 %v1018
        %1034 = vmatprep.subr.mxu0 0.0
        %1035 = vmatpush1.msra.mxu0 %v1019
        %1036 = vmatprep.subr.mxu0 0.0
        %1037 = vmatpush1.msra.mxu0 %v1020
        %1038 = vmatprep.subr.mxu0 0.0
        %1039 = vmatpush1.msra.mxu0 %v1021
        %1040 = vmatprep.subr.mxu0 0.0
        %1041 = vmatpush1.msra.mxu0 0.0
        %1042 = vmatprep.subr.mxu0 0.0
        %1043 = vmatpush1.msra.mxu0 0.0
        %1044 = vmatprep.subr.mxu0 0.0
        %1045 = vmatpush1.msra.mxu0 0.0
        %1046 = vmatprep.subr.mxu0 0.0
        %1047 = vmatpush1.msra.mxu0 0.0
        %1048 = vmatprep.subr.mxu0 0.0
        %1049 = vmatpush1.msra.mxu0 0.0
        %1050 = vmatprep.subr.mxu0 0.0
        %1051 = vmatpush1.msra.mxu0 0.0
        %1052 = vmatprep.subr.mxu0 0.0
        %1053 = vmatpush1.msra.mxu0 0.0
        %1054 = vmatprep.subr.mxu0 0.0
        %1055 = vmatpush1.msra.mxu0 0.0
        %1056 = vmatprep.subr.mxu0 0.0
        %1057 = vmatpush1.msra.mxu0 0.0
        %1058 = vmatprep.subr.mxu0 0.0
        %1059 = vmatpush1.msra.mxu0 0.0
        %1060 = vmatprep.subr.mxu0 0.0
        %1061 = vmatpush1.msra.mxu0 0.0
        %1062 = vmatprep.subr.mxu0 0.0
        %1063 = vmatpush1.msra.mxu0 0.0
        %1064 = vmatprep.subr.mxu0 0.0
        %1065 = vmatpush1.msra.mxu0 0.0
        %1066 = vmatprep.subr.mxu0 0.0
        %1067 = vmatpush1.msra.mxu0 0.0
        %1068 = vmatprep.subr.mxu0 0.0
        %1069 = vmatpush1.msra.mxu0 0.0
        %1070 = vmatprep.subr.mxu0 0.0
        %1071 = vmatpush1.msra.mxu0 0.0
        %1072 = vmatprep.subr.mxu0 0.0
        %1073 = vmatpush1.msra.mxu0 0.0
        %1074 = vmatprep.subr.mxu0 0.0
        %1075 = vmatpush1.msra.mxu0 0.0
        %1076 = vmatprep.subr.mxu0 0.0
        %1077 = vmatpush1.msra.mxu0 0.0
        %1078 = vmatprep.subr.mxu0 0.0
        %1079 = vmatpush1.msra.mxu0 0.0
        %1080 = vmatprep.subr.mxu0 0.0
        %1081 = vmatpush1.msra.mxu0 0.0
        %1082 = vmatprep.subr.mxu0 0.0
        %1083 = vmatpush1.msra.mxu0 0.0
        %1084 = vmatprep.subr.mxu0 0.0
        %1085 = vmatpush1.msra.mxu0 0.0
        %1086 = vmatprep.subr.mxu0 0.0
        %1087 = vmatpush1.msra.mxu0 0.0
        %1088 = vmatprep.subr.mxu0 0.0
        %1089 = vmatpush1.msra.mxu0 0.0
        %1090 = vmatprep.subr.mxu0 0.0
        %1091 = vmatpush1.msra.mxu0 0.0
        %1092 = vmatprep.subr.mxu0 0.0
        %1093 = vmatpush1.msra.mxu0 0.0
        %1094 = vmatprep.subr.mxu0 0.0
        %1095 = vmatpush1.msra.mxu0 0.0
        %1096 = vmatprep.mubr.f32.mxu0 0.0
        %1097 = vmatmul.mubr.f32.gmra.mrb[0].mxu0 %v1030
        %v1098 = vpop.f32.mrb[0].mxu0
        %v1099 = vadd.f32 %v1027, %v1098
        %v1100 = vpop.f32.mrb[0].mxu0
        %1101 = vdwg.mxu0
        %1102 = vst [vmem:[%s408] sm:$0xff] %v1099
        %s1103 = sand.u32 %s210, 1
        %s1104 = scalar_lea.sflag [#allocation7], %s1103
        %s1105 = sand.u32 %s210, 1
        %s1106 = smul.addr %s1105, 8
        %s1107 = scalar_lea.vmem [#allocation16], %s1106
        // Predicated region
        $region77: #{tpu_custom_call.1} parent=47 // pred_check
          %p1108 = pneg %p220
        $region78: #{tpu_custom_call.1} parent=47 // pred_check_branch
          %1110 = sbr.rel (%p1108) target = $region80
        $region79: #{tpu_custom_call.1} parent=47 // pred_region
          %s1112 = ssub.s32 128, 128
          %1113 = vsyncadd %s1104, %s1112
          %s1114 = sadd.s32 %s34, %s33
          %s1115 = smul.addr %s1114, 128
          %s1116 = scalar_lea.hbm %s7, %s1115
          %s1118 = sshll.u32 %s1107, 4
          %s1119 = int_to_ptr.vmem [resolvable:$true] %s1118
          %1121 = dma.vmem_to_hbm [thread:$0]  %s1119, 128, %s1116, %s1104
        $region80: #{tpu_custom_call.1} parent=47 // pred_fallthru
          _
      $region48: #{tpu_custom_call.1} parent=5 // pred_fallthru
        _
      %p1122 = scmp.le.s32.totalorder 2, %s24
      // Predicated region
      $region81: #{tpu_custom_call.1} parent=5 // pred_check
        %p1123 = pneg %p1122
      $region82: #{tpu_custom_call.1} parent=5 // pred_check_branch
        %1125 = sbr.rel (%p1123) target = $region84
      $region83: #{tpu_custom_call.1} parent=5 // pred_region
        %s1126 = ssub.s32 %s24, 2
        // Predicated region
        $region85: #{tpu_custom_call.1} parent=83 // pred_check
          %p1127 = pneg %p226
        $region86: #{tpu_custom_call.1} parent=83 // pred_check_branch
          %1129 = sbr.rel (%p1127) target = $region88
        $region87: #{tpu_custom_call.1} parent=83 // pred_region
          %s1130 = sand.u32 %s211, 1
          %s1131 = scalar_lea.sflag [#allocation7], %s1130
          %s1132 = sand.u32 %s211, 1
          %s1133 = smul.addr %s1132, 8
          %s1134 = scalar_lea.vmem [#allocation16], %s1133
          %1135 = dma.done %s1131, 128
        $region88: #{tpu_custom_call.1} parent=83 // pred_fallthru
          _
      $region84: #{tpu_custom_call.1} parent=5 // pred_fallthru
        _
    $region6: #{tpu_custom_call.1} parent=1 // loop_footer
      %s28 = sadd.s32 1, %s24
    $region7: #{tpu_custom_call.1} parent=1 // loop_footer_branch
      %23 = sbr.rel target = $region3
    $region8: #{tpu_custom_call.1} parent=1 // loop_exit
      _
    %1136 = vsyncpa [#allocation6], 1
    %s1137 = scalar_lea.sflag [#allocation6], 1
    %1138 = vsyncpa %s1137, 1
    %1139 = vsyncpa [#allocation9], 1
    %s1140 = scalar_lea.sflag [#allocation9], 1
    %1141 = vsyncpa %s1140, 1
    %1142 = vsyncpa [#allocation12], 1
    %1143 = vsyncpa [#allocation15], 1
    %1144 = vsyncpa [#allocation7], 1
    %s1145 = scalar_lea.sflag [#allocation7], 1
    %1146 = vsyncpa %s1145, 1

</llo_original>
